<compile_context>
chip_gen: v5e
topology: v5e:2x2
jax: 0.10.0
libtpu: 0.0.40
codegen_flags: <defaults>
</compile_context>

<pallas_src>
import functools
import math

import jax
import jax.numpy as jnp
from jax.experimental import pallas as pl
from jax.experimental.pallas import tpu as pltpu


def _round_up(x, m):
    return (x + m - 1) // m * m


@functools.lru_cache(maxsize=1)
def _physical_vmem_bytes():
    """Best-effort physical VMEM per TensorCore (used to size scoped limits)."""
    try:
        info = pltpu.get_tpu_info()
        v = getattr(info, "vmem_capacity_bytes", None)
        if v:
            return int(v)
    except Exception:
        pass
    return 64 << 20  # conservative: v7x-class per-TC VMEM


def _vmem_budgets():
    phys = _physical_vmem_bytes()
    if phys >= (96 << 20):
        # v5e / v6e class: 128 MiB physical VMEM per TC.  The scoped default is
        # only 16/32 MiB, so the explicit vmem_limit_bytes below is what
        # actually unlocks the larger fused slabs.
        return dict(fused_threshold=48 << 20, fused_cap=96 << 20,
                    tiled_cap=48 << 20, small_vmem=False)
    # v7x class: 64 MiB physical per TC — keep tighter caps so double
    # buffering (and the pipeline's own scratch/semaphores) still fit.
    return dict(fused_threshold=24 << 20, fused_cap=48 << 20,
                tiled_cap=40 << 20, small_vmem=True)


# ----------------------------------------------------------------------------
# Fused whole-slab kernel (one grid step per batch element).
# ----------------------------------------------------------------------------
def _gcn_fused_kernel(w1_ref, w2_ref, adj_ref, x_ref, out_ref, *, reassociate):
    # Blocks are (1, R, C); squeeze the batch dim so every dot is a 2-D MXU
    # matmul (3-D operands to jnp.dot do not lower as batched MXU matmuls).
    w1 = w1_ref[0]      # (N, N)
    w2 = w2_ref[0]      # (N, N)
    adj = adj_ref[0]    # (N, N)
    x = x_ref[0]        # (N, Dp)
    if reassociate:
        # out = w1 @ x + w2 @ (adj @ x): fewer FLOPs when D < N and no (N,N)
        # f32 'support' intermediate.
        t = jnp.dot(adj, x, preferred_element_type=jnp.float32)
        out = (jnp.dot(w1, x, preferred_element_type=jnp.float32)
               + jnp.dot(w2, t.astype(x.dtype),
                         preferred_element_type=jnp.float32))
    else:
        # Original order: out = (w1 + w2 @ adj) @ x  (cheaper when D >= N).
        # The w1 add stays in-kernel (VPU work hidden under the MXU).
        support = w1 + jnp.dot(w2, adj, preferred_element_type=jnp.float32)
        out = jnp.dot(support.astype(x.dtype), x,
                      preferred_element_type=jnp.float32)
    out_ref[0] = out.astype(out_ref.dtype)


# ----------------------------------------------------------------------------
# Tiled kernels (P3 accumulator pattern, reduction axis last / "arbitrary").
# When the output dtype is f32 we accumulate directly into the VMEM-resident
# output block (its BlockSpec index is constant across k), saving the
# accumulator scratch and the final acc->out copy.
# ----------------------------------------------------------------------------
def _bmm_kernel_out_acc(a_ref, b_ref, o_ref):
    # o[b, i_block, :] += a[b, i_block, k_block] @ b[b, k_block, :]   (o is f32)
    k = pl.program_id(2)

    @pl.when(k == 0)
    def _():
        o_ref[...] = jnp.zeros_like(o_ref)

    o_ref[0] += jnp.dot(a_ref[0], b_ref[0], preferred_element_type=jnp.float32)


def _bmm_kernel_scratch_acc(a_ref, b_ref, o_ref, acc_ref):
    # Non-f32 output: accumulate in an f32 scratch, cast once at the end.
    k = pl.program_id(2)

    @pl.when(k == 0)
    def _():
        acc_ref[...] = jnp.zeros_like(acc_ref)

    acc_ref[...] += jnp.dot(a_ref[0], b_ref[0],
                            preferred_element_type=jnp.float32)

    @pl.when(k == pl.num_programs(2) - 1)
    def _():
        o_ref[0] = acc_ref[...].astype(o_ref.dtype)


def _dual_bmm_kernel_out_acc(w1_ref, x_ref, w2_ref, t_ref, o_ref):
    # o[b, i_block, :] += w1[b,i,k] @ x[b,k,:] + w2[b,i,k] @ t[b,k,:]  (o is f32)
    k = pl.program_id(2)

    @pl.when(k == 0)
    def _():
        o_ref[...] = jnp.zeros_like(o_ref)

    o_ref[0] += (
        jnp.dot(w1_ref[0], x_ref[0], preferred_element_type=jnp.float32)
        + jnp.dot(w2_ref[0], t_ref[0], preferred_element_type=jnp.float32))


def _dual_bmm_kernel_scratch_acc(w1_ref, x_ref, w2_ref, t_ref, o_ref, acc_ref):
    k = pl.program_id(2)

    @pl.when(k == 0)
    def _():
        acc_ref[...] = jnp.zeros_like(acc_ref)

    acc_ref[...] += (
        jnp.dot(w1_ref[0], x_ref[0], preferred_element_type=jnp.float32)
        + jnp.dot(w2_ref[0], t_ref[0], preferred_element_type=jnp.float32))

    @pl.when(k == pl.num_programs(2) - 1)
    def _():
        o_ref[0] = acc_ref[...].astype(o_ref.dtype)


def _tiled_bmm(a, b, *, tm, tk, out_dtype, vmem_limit_bytes):
    """out[i] = a[i] @ b[i];  a:(B,M,K), b:(B,K,Dp);  M%tm==0, K%tk==0."""
    B, M, K = a.shape
    Dp = b.shape[-1]
    acc_in_out = jnp.dtype(out_dtype) == jnp.float32
    kernel = _bmm_kernel_out_acc if acc_in_out else _bmm_kernel_scratch_acc
    scratch = [] if acc_in_out else [pltpu.VMEM((tm, Dp), jnp.float32)]
    return pl.pallas_call(
        kernel,
        out_shape=jax.ShapeDtypeStruct((B, M, Dp), out_dtype),
        grid_spec=pltpu.PrefetchScalarGridSpec(
            num_scalar_prefetch=0,
            grid=(B, M // tm, K // tk),
            in_specs=[
                pl.BlockSpec((1, tm, tk), lambda bi, i, k: (bi, i, k)),
                pl.BlockSpec((1, tk, Dp), lambda bi, i, k: (bi, k, 0)),
            ],
            out_specs=pl.BlockSpec((1, tm, Dp), lambda bi, i, k: (bi, i, 0)),
            scratch_shapes=scratch,
        ),
        compiler_params=pltpu.CompilerParams(
            dimension_semantics=("parallel", "parallel", "arbitrary"),
            vmem_limit_bytes=vmem_limit_bytes),
    )(a, b)


def _tiled_dual_bmm(w1, x, w2, t, *, tm, tk, out_dtype, vmem_limit_bytes):
    """out[i] = w1[i] @ x[i] + w2[i] @ t[i]."""
    B, M, K = w1.shape
    Dp = x.shape[-1]
    acc_in_out = jnp.dtype(out_dtype) == jnp.float32
    kernel = (_dual_bmm_kernel_out_acc if acc_in_out
              else _dual_bmm_kernel_scratch_acc)
    scratch = [] if acc_in_out else [pltpu.VMEM((tm, Dp), jnp.float32)]
    wspec = pl.BlockSpec((1, tm, tk), lambda bi, i, k: (bi, i, k))
    vspec = pl.BlockSpec((1, tk, Dp), lambda bi, i, k: (bi, k, 0))
    return pl.pallas_call(
        kernel,
        out_shape=jax.ShapeDtypeStruct((B, M, Dp), out_dtype),
        grid_spec=pltpu.PrefetchScalarGridSpec(
            num_scalar_prefetch=0,
            grid=(B, M // tm, K // tk),
            in_specs=[wspec, vspec, wspec, vspec],
            out_specs=pl.BlockSpec((1, tm, Dp), lambda bi, i, k: (bi, i, 0)),
            scratch_shapes=scratch,
        ),
        compiler_params=pltpu.CompilerParams(
            dimension_semantics=("parallel", "parallel", "arbitrary"),
            vmem_limit_bytes=vmem_limit_bytes),
    )(w1, x, w2, t)


# ----------------------------------------------------------------------------
# Wrapper.
# ----------------------------------------------------------------------------
def graph_convolution(weight1, weight2, adj, x, *, tm=512, tk=256,
                      cast_matrices_to_bf16=False, max_fused_slab_bytes=None):
    """Pallas implementation of GraphConvolution.forward(input=x, adj=adj).

    weight1, weight2, adj : (B, N, N);  x : (B, N, D)  ->  (B, N, D)

    Note: the large-N path reassociates to w1@x + w2@(adj@x), which differs
    from the module's (w1 + w2@adj)@x only at f32 rounding level.
    """
    B, N, _ = weight1.shape
    D = x.shape[-1]
    out_dtype = x.dtype

    budgets = _vmem_budgets()
    if max_fused_slab_bytes is None:
        max_fused_slab_bytes = budgets["fused_threshold"]

    # Optional accuracy/perf trade: bf16 operands with f32 MXU accumulation.
    # Off by default so the math matches the module's f32 forward.
    if cast_matrices_to_bf16:
        weight1 = weight1.astype(jnp.bfloat16)
        weight2 = weight2.astype(jnp.bfloat16)
        adj = adj.astype(jnp.bfloat16)
        x = x.astype(jnp.bfloat16)
    compute_dtype = x.dtype
    itemsize = jnp.dtype(compute_dtype).itemsize

    # Lane-dense output: pad the feature dim to a multiple of 128 so stores are
    # unmasked vst; zero columns contribute zero output and are sliced away.
    Dp = _round_up(max(D, 1), 128)
    x_p = jnp.pad(x, ((0, 0), (0, 0), (0, Dp - D))) if Dp != D else x

    reassociate = D < N

    # Whole-slab VMEM estimate per grid step: double-buffered in/out blocks
    # plus the in-kernel f32 intermediate ('t' if reassociated, else 'support').
    inter_bytes = (N * Dp if reassociate else N * N) * 4
    slab_bytes = 2 * (3 * N * N + 2 * N * Dp) * itemsize + inter_bytes

    # On 2-TensorCore chips (v7x class) a B==1 fused call leaves one core idle;
    # route to the tiled path (row-block axis is "parallel") when there are at
    # least 2 row blocks to shard across the cores.
    prefer_tiled_for_megacore = (
        budgets["small_vmem"] and B == 1
        and _round_up(N, math.lcm(tm, tk)) // tm >= 2)

    if slab_bytes <= max_fused_slab_bytes and not prefer_tiled_for_megacore:
        # --- Fused single-kernel path: one grid step per batch element. ---
        fused_vmem_limit = int(min(budgets["fused_cap"],
                                   max(32 << 20, slab_bytes + (8 << 20))))
        mat_spec = pl.BlockSpec((1, N, N), lambda bi: (bi, 0, 0))
        vec_spec = pl.BlockSpec((1, N, Dp), lambda bi: (bi, 0, 0))
        out_p = pl.pallas_call(
            functools.partial(_gcn_fused_kernel, reassociate=reassociate),
            out_shape=jax.ShapeDtypeStruct((B, N, Dp), out_dtype),
            grid_spec=pltpu.PrefetchScalarGridSpec(
                num_scalar_prefetch=0,
                grid=(B,),
                in_specs=[mat_spec, mat_spec, mat_spec, vec_spec],
                out_specs=vec_spec,
            ),
            compiler_params=pltpu.CompilerParams(
                dimension_semantics=("parallel",),
                vmem_limit_bytes=fused_vmem_limit),
        )(weight1, weight2, adj, x_p)
        return out_p[:, :, :D] if Dp != D else out_p

    # --- Tiled, reassociated path:  out = w1 @ x + w2 @ (adj @ x). ---
    # Shrink tm if the double-buffered per-step working set would exceed the
    # per-generation VMEM budget (e.g. very wide Dp).  tk stays at the MXU
    # size; tm never drops below tk.
    while tm > tk and (2 * 2 * (2 * tm * tk + 2 * tk * Dp + tm * Dp) * itemsize
                       > budgets["tiled_cap"]):
        tm //= 2

    # Pad N so both the row-block (tm) and reduction-block (tk) sizes divide it;
    # zero padding does not change the valid output rows/cols.
    lcm = math.lcm(tm, tk)
    N_p = _round_up(N, lcm)
    pad_n = N_p - N
    if pad_n:
        w1_p = jnp.pad(weight1, ((0, 0), (0, pad_n), (0, pad_n)))
        w2_p = jnp.pad(weight2, ((0, 0), (0, pad_n), (0, pad_n)))
        adj_p = jnp.pad(adj, ((0, 0), (0, pad_n), (0, pad_n)))
        x_pp = jnp.pad(x_p, ((0, 0), (0, pad_n), (0, 0)))
    else:
        w1_p, w2_p, adj_p, x_pp = weight1, weight2, adj, x_p

    # Explicit VMEM budget with headroom: sized for the dual kernel's per-step
    # working set (2 weight tiles + 2 feature tiles + resident output,
    # double-buffered).  The output block doubles as the f32 accumulator, so
    # no extra scratch term is needed for the f32 path.
    step_bytes = 2 * (2 * tm * tk + 2 * tk * Dp + tm * Dp) * itemsize
    vmem_limit = int(min(budgets["tiled_cap"],
                         max(16 << 20, 2 * step_bytes)))

    # Stage 1: T = adj @ x.  Kept in f32 (exact accumulation into the output
    # block) unless the operands were cast to bf16, in which case T is bf16 so
    # stage 2 runs fully at the native bf16 MXU rate.
    t_dtype = jnp.bfloat16 if cast_matrices_to_bf16 else jnp.float32
    t = _tiled_bmm(adj_p, x_pp, tm=tm, tk=tk, out_dtype=t_dtype,
                   vmem_limit_bytes=vmem_limit)
    # Stage 2: out = w1 @ x + w2 @ T.
    out_p = _tiled_dual_bmm(w1_p, x_pp, w2_p, t, tm=tm, tk=tk,
                            out_dtype=out_dtype, vmem_limit_bytes=vmem_limit)
    return out_p[:, :N, :D]


if __name__ == "__main__":
    key = jax.random.PRNGKey(0)
    (k_adj, k_x, k_w2,
     k_adj2, k_x2, k_w12, k_w22) = jax.random.split(key, 7)
    hi = jax.lax.Precision.HIGHEST

    # --- Check 1: small shapes consistent with the module (fused path). -----
    # batch=2, in_features (nodes)=16, node feature dim=32.
    B, N, D = 2, 16, 32
    # weight1 initialized as batched identity (per __init__); weight2 would be
    # zeros in the module -- use small random values so the bmm is exercised.
    weight1 = jnp.broadcast_to(jnp.eye(N, dtype=jnp.float32), (B, N, N))
    weight2 = 0.1 * jax.random.normal(k_w2, (B, N, N), dtype=jnp.float32)
    adj = jax.random.normal(k_adj, (B, N, N), dtype=jnp.float32)
    x = jax.random.normal(k_x, (B, N, D), dtype=jnp.float32)

    out = jax.block_until_ready(graph_convolution(weight1, weight2, adj, x))
    ref = jnp.matmul(weight1 + jnp.matmul(weight2, adj, precision=hi),
                     x, precision=hi)
    assert out.shape == (B, N, D)
    assert jnp.allclose(out, ref, atol=1e-4, rtol=1e-4)

    # --- Check 2: exercise the tiled / reassociated path (still small). -----
    # Force the tiled path and use 128 tiles so the reduction axis has >1 step
    # (production default stays tm=512, tk=256).
    B2, N2, D2 = 2, 256, 64
    w1b = (jnp.broadcast_to(jnp.eye(N2, dtype=jnp.float32), (B2, N2, N2))
           + 0.05 * jax.random.normal(k_w12, (B2, N2, N2), dtype=jnp.float32))
    w2b = 0.1 * jax.random.normal(k_w22, (B2, N2, N2), dtype=jnp.float32)
    adjb = jax.random.normal(k_adj2, (B2, N2, N2), dtype=jnp.float32)
    xb = jax.random.normal(k_x2, (B2, N2, D2), dtype=jnp.float32)

    outb = jax.block_until_ready(
        graph_convolution(w1b, w2b, adjb, xb, tm=128, tk=128,
                          max_fused_slab_bytes=0))
    refb = jnp.matmul(w1b + jnp.matmul(w2b, adjb, precision=hi),
                      xb, precision=hi)
    assert outb.shape == (B2, N2, D2)
    # Reassociated summation order differs from the reference at f32 rounding
    # level; tolerance reflects that.
    assert jnp.allclose(outb, refb, atol=2e-3, rtol=2e-3)

    # --- Check 3: optional bf16 operand cast (tiled path, loose tolerance). --
    outc = jax.block_until_ready(
        graph_convolution(w1b, w2b, adjb, xb, tm=128, tk=128,
                          max_fused_slab_bytes=0, cast_matrices_to_bf16=True))
    assert outc.shape == (B2, N2, D2)
    rel = (jnp.linalg.norm(outc.astype(jnp.float32) - refb)
           / jnp.linalg.norm(refb))
    assert rel < 2e-2

    print("KERNEL_OK")
</pallas_src>

<mosaic_0001>
module attributes {stable_mosaic.version = 11 : i64} {
  func.func @_gcn_fused_kernel(%arg0: i32, %arg1: memref<1x16x16xf32, #tpu.memory_space<vmem>>, %arg2: memref<1x16x16xf32, #tpu.memory_space<vmem>>, %arg3: memref<1x16x16xf32, #tpu.memory_space<vmem>>, %arg4: memref<1x16x128xf32, #tpu.memory_space<vmem>>, %arg5: memref<1x16x128xf32, #tpu.memory_space<vmem>>) attributes {dimension_semantics = [#tpu.dimension_semantics<parallel>], iteration_bounds = array<i64: 2>, scalar_prefetch = 0 : i64, scratch_operands = 0 : i64, tpu.core_type = #tpu.core_type<tc>, window_params = [{transform_indices = @transform_0, window_bounds = array<i64: 1, 16, 16>}, {transform_indices = @transform_1, window_bounds = array<i64: 1, 16, 16>}, {transform_indices = @transform_2, window_bounds = array<i64: 1, 16, 16>}, {transform_indices = @transform_3, window_bounds = array<i64: 1, 16, 128>}, {transform_indices = @transform_4, window_bounds = array<i64: 1, 16, 128>}]} {
    %c0 = arith.constant 0 : index
    %c0_0 = arith.constant 0 : index
    %c0_1 = arith.constant 0 : index
    %0 = vector.load %arg1[%c0, %c0_0, %c0_1] : memref<1x16x16xf32, #tpu.memory_space<vmem>>, vector<1x16x16xf32>
    %1 = vector.shape_cast %0 : vector<1x16x16xf32> to vector<16x16xf32>
    %c0_2 = arith.constant 0 : index
    %c0_3 = arith.constant 0 : index
    %c0_4 = arith.constant 0 : index
    %2 = vector.load %arg2[%c0_2, %c0_3, %c0_4] : memref<1x16x16xf32, #tpu.memory_space<vmem>>, vector<1x16x16xf32>
    %3 = vector.shape_cast %2 : vector<1x16x16xf32> to vector<16x16xf32>
    %c0_5 = arith.constant 0 : index
    %c0_6 = arith.constant 0 : index
    %c0_7 = arith.constant 0 : index
    %4 = vector.load %arg3[%c0_5, %c0_6, %c0_7] : memref<1x16x16xf32, #tpu.memory_space<vmem>>, vector<1x16x16xf32>
    %5 = vector.shape_cast %4 : vector<1x16x16xf32> to vector<16x16xf32>
    %c0_8 = arith.constant 0 : index
    %c0_9 = arith.constant 0 : index
    %c0_10 = arith.constant 0 : index
    %6 = vector.load %arg4[%c0_8, %c0_9, %c0_10] : memref<1x16x128xf32, #tpu.memory_space<vmem>>, vector<1x16x128xf32>
    %7 = vector.shape_cast %6 : vector<1x16x128xf32> to vector<16x128xf32>
    %cst = arith.constant dense<0.000000e+00> : vector<16x16xf32>
    %8 = tpu.matmul %3, %5, %cst {dimension_numbers = #tpu.dot_dimension_numbers<[1], [0], [0], [1], [0, 0, 1, 1], [], []>} : vector<16x16xf32>, vector<16x16xf32>, vector<16x16xf32> -> vector<16x16xf32>
    %9 = arith.addf %1, %8 : vector<16x16xf32>
    %cst_11 = arith.constant dense<0.000000e+00> : vector<16x128xf32>
    %10 = tpu.matmul %9, %7, %cst_11 {dimension_numbers = #tpu.dot_dimension_numbers<[1], [0], [0], [1], [0, 0, 1, 1], [], []>} : vector<16x16xf32>, vector<16x128xf32>, vector<16x128xf32> -> vector<16x128xf32>
    %c0_12 = arith.constant 0 : index
    %c0_13 = arith.constant 0 : index
    %c0_14 = arith.constant 0 : index
    %11 = vector.load %arg5[%c0_12, %c0_13, %c0_14] : memref<1x16x128xf32, #tpu.memory_space<vmem>>, vector<1x16x128xf32>
    %12 = vector.shape_cast %11 : vector<1x16x128xf32> to vector<16x128xf32>
    %13 = vector.shape_cast %10 : vector<16x128xf32> to vector<1x16x128xf32>
    tpu.vector_store %arg5[%c0_12, %c0_13, %c0_14], %13 {strides = array<i32>} : memref<1x16x128xf32, #tpu.memory_space<vmem>>, vector<1x16x128xf32>,
    return
  }
  func.func @transform_0(%arg0: i32) -> (i32, i32, i32) {
    %c0_i32 = arith.constant 0 : i32
    %c0_i32_0 = arith.constant 0 : i32
    %c0_i32_1 = arith.constant 0 : i32
    return %arg0, %c0_i32, %c0_i32_0 : i32, i32, i32
  }
  func.func @transform_1(%arg0: i32) -> (i32, i32, i32) {
    %c0_i32 = arith.constant 0 : i32
    %c0_i32_0 = arith.constant 0 : i32
    %c0_i32_1 = arith.constant 0 : i32
    return %arg0, %c0_i32, %c0_i32_0 : i32, i32, i32
  }
  func.func @transform_2(%arg0: i32) -> (i32, i32, i32) {
    %c0_i32 = arith.constant 0 : i32
    %c0_i32_0 = arith.constant 0 : i32
    %c0_i32_1 = arith.constant 0 : i32
    return %arg0, %c0_i32, %c0_i32_0 : i32, i32, i32
  }
  func.func @transform_3(%arg0: i32) -> (i32, i32, i32) {
    %c0_i32 = arith.constant 0 : i32
    %c0_i32_0 = arith.constant 0 : i32
    %c0_i32_1 = arith.constant 0 : i32
    return %arg0, %c0_i32, %c0_i32_0 : i32, i32, i32
  }
  func.func @transform_4(%arg0: i32) -> (i32, i32, i32) {
    %c0_i32 = arith.constant 0 : i32
    %c0_i32_0 = arith.constant 0 : i32
    %c0_i32_1 = arith.constant 0 : i32
    return %arg0, %c0_i32, %c0_i32_0 : i32, i32, i32
  }
}

</mosaic_0001>

<llo_original>
// kernel: tpu_custom_call.1
$region0: #{tpu_custom_call.1}
  #allocation0 [shape = 'u32[]', space=smem, size = 0x4, offset = 0x4, fixed_abs, tag = 'smem constant byte address 0x4 - core index']
  #allocation1 [shape = 'u32[72,128]{1,0:T(1,128)}', space=vmem, size = 0x9000, scoped, tag = 'internal scratch']
  %s0 = inlined_call_operand.hbm [shape: f32[2,16,16], index: 0, kind: input, shape index: {}]
  %s1 = inlined_call_operand.hbm [shape: f32[2,16,16], index: 1, kind: input, shape index: {}]
  %s2 = inlined_call_operand.hbm [shape: f32[2,16,16], index: 2, kind: input, shape index: {}]
  %s3 = inlined_call_operand.hbm [shape: f32[2,16,128], index: 3, kind: input, shape index: {}]
  %s4 = inlined_call_operand.hbm [shape: f32[2,16,128], index: 4, kind: output, shape index: {}]
  %s5 = sld [smem:[#allocation0]]
  $region65: #{tpu_custom_call.1} parent=0
    _
  %s7 = ssub.s32 1, %s5
  %s8 = scalar_select 0, %s7, %s5
  $region1: #{tpu_custom_call.1} parent=0
    #allocation2 [shape = 'u8[16384]{0}', space=vmem, size = 0x4000, scoped, tag = 'input window, operand 0']
    #allocation3 [shape = 's32[2]{0}', space=sflag, size = 0x8, scoped, tag = 'scoped memory for tpu_custom_call.1']
    #allocation4 [shape = 's32[2]{0}', space=sflag, size = 0x8, scoped, tag = 'scoped memory for tpu_custom_call.1']
    #allocation5 [shape = 'u8[16384]{0}', space=vmem, size = 0x4000, scoped, tag = 'input window, operand 1']
    #allocation6 [shape = 's32[2]{0}', space=sflag, size = 0x8, scoped, tag = 'scoped memory for tpu_custom_call.1']
    #allocation7 [shape = 'u8[16384]{0}', space=vmem, size = 0x4000, scoped, tag = 'input window, operand 2']
    #allocation8 [shape = 'u8[16384]{0}', space=vmem, size = 0x4000, scoped, tag = 'input window, operand 3']
    #allocation9 [shape = 's32[2]{0}', space=sflag, size = 0x8, scoped, tag = 'scoped memory for tpu_custom_call.1']
    #allocation10 [shape = 'u8[16384]{0}', space=vmem, size = 0x4000, scoped, tag = 'output window, operand 0']
    %9 = vsyncpa [#allocation3], 0
    %s10 = scalar_lea.sflag [#allocation3], 1
    %11 = vsyncpa %s10, 0
    %12 = vsyncpa [#allocation6], 0
    %s13 = scalar_lea.sflag [#allocation6], 1
    %14 = vsyncpa %s13, 0
    %15 = vsyncpa [#allocation9], 0
    %s16 = scalar_lea.sflag [#allocation9], 1
    %17 = vsyncpa %s16, 0
    %18 = vsyncpa [#allocation4], 0
    %s19 = scalar_lea.sflag [#allocation4], 1
    %20 = vsyncpa %s19, 0
    loop: start=0, step=1, limit=4
    $region2: #{tpu_custom_call.1} parent=1 // loop_pre_header
      _
    $region3: #{tpu_custom_call.1} parent=1 // loop_header
      %s22 = sphi 0, %s26
      %p23 = scmp.ge.s32.totalorder %s22, 4
      %s32 = sphi 0, %s34
      %s35 = sphi 0, %s32
      %s36 = sphi 0, %s35
      %s52 = sphi 0, %s36
      %s58 = sphi 0, %s60
      %s61 = sphi 0, %s58
      %s62 = sphi 0, %s61
      %s78 = sphi 0, %s62
      %s84 = sphi 0, %s86
      %s87 = sphi 0, %s84
      %s88 = sphi 0, %s87
      %s104 = sphi 0, %s88
      %s110 = sphi 0, %s112
      %s113 = sphi 0, %s110
      %s114 = sphi 0, %s113
      %s130 = sphi 0, %s114
      %s136 = sphi 0, %s138
      %s139 = sphi 0, %s136
      %s140 = sphi 0, %s139
      %s156 = sphi 0, %s140
    $region4: #{tpu_custom_call.1} parent=1 // loop_header_branch
      %25 = sbr.rel (%p23) target = $region8
    $region5: #{tpu_custom_call.1} parent=1 // loop_body
      %s27 = ssub.s32 %s22, 1
      %s28 = ssub.s32 %s22, 2
      %s29 = sadd.s32 %s22, 1
      %s30 = ssub.s32 %s22, %s29
      %p31 = scmp.eq.s32.totalorder %s30, 0
      %s33 = sadd.s32 %s32, 1
      %s34 = scalar_select %p31, %s32, %s33
      %p37 = pneg %p31
      %p38 = scmp.eq.s32.totalorder %s22, 1
      %p39 = por %p37, %p38
      %p40 = scmp.ne.s32.totalorder %s32, %s35
      %p41 = scmp.eq.s32.totalorder %s22, 0
      %p42 = por %p40, %p41
      %p43 = scmp.ne.s32.totalorder %s32, %s35
      %p44 = scmp.eq.s32.totalorder %s27, 1
      %p45 = por %p43, %p44
      %p46 = scmp.ne.s32.totalorder %s35, %s36
      %p47 = scmp.eq.s32.totalorder %s27, 0
      %p48 = por %p46, %p47
      %p49 = scmp.ne.s32.totalorder %s35, %s36
      %p50 = scmp.eq.s32.totalorder %s28, 1
      %p51 = por %p49, %p50
      %p53 = scmp.ne.s32.totalorder %s36, %s52
      %p54 = scmp.eq.s32.totalorder %s28, 0
      %p55 = por %p53, %p54
      %s56 = ssub.s32 %s22, %s29
      %p57 = scmp.eq.s32.totalorder %s56, 0
      %s59 = sadd.s32 %s58, 1
      %s60 = scalar_select %p57, %s58, %s59
      %p63 = pneg %p57
      %p64 = scmp.eq.s32.totalorder %s22, 1
      %p65 = por %p63, %p64
      %p66 = scmp.ne.s32.totalorder %s58, %s61
      %p67 = scmp.eq.s32.totalorder %s22, 0
      %p68 = por %p66, %p67
      %p69 = scmp.ne.s32.totalorder %s58, %s61
      %p70 = scmp.eq.s32.totalorder %s27, 1
      %p71 = por %p69, %p70
      %p72 = scmp.ne.s32.totalorder %s61, %s62
      %p73 = scmp.eq.s32.totalorder %s27, 0
      %p74 = por %p72, %p73
      %p75 = scmp.ne.s32.totalorder %s61, %s62
      %p76 = scmp.eq.s32.totalorder %s28, 1
      %p77 = por %p75, %p76
      %p79 = scmp.ne.s32.totalorder %s62, %s78
      %p80 = scmp.eq.s32.totalorder %s28, 0
      %p81 = por %p79, %p80
      %s82 = ssub.s32 %s22, %s29
      %p83 = scmp.eq.s32.totalorder %s82, 0
      %s85 = sadd.s32 %s84, 1
      %s86 = scalar_select %p83, %s84, %s85
      %p89 = pneg %p83
      %p90 = scmp.eq.s32.totalorder %s22, 1
      %p91 = por %p89, %p90
      %p92 = scmp.ne.s32.totalorder %s84, %s87
      %p93 = scmp.eq.s32.totalorder %s22, 0
      %p94 = por %p92, %p93
      %p95 = scmp.ne.s32.totalorder %s84, %s87
      %p96 = scmp.eq.s32.totalorder %s27, 1
      %p97 = por %p95, %p96
      %p98 = scmp.ne.s32.totalorder %s87, %s88
      %p99 = scmp.eq.s32.totalorder %s27, 0
      %p100 = por %p98, %p99
      %p101 = scmp.ne.s32.totalorder %s87, %s88
      %p102 = scmp.eq.s32.totalorder %s28, 1
      %p103 = por %p101, %p102
      %p105 = scmp.ne.s32.totalorder %s88, %s104
      %p106 = scmp.eq.s32.totalorder %s28, 0
      %p107 = por %p105, %p106
      %s108 = ssub.s32 %s22, %s29
      %p109 = scmp.eq.s32.totalorder %s108, 0
      %s111 = sadd.s32 %s110, 1
      %s112 = scalar_select %p109, %s110, %s111
      %p115 = pneg %p109
      %p116 = scmp.eq.s32.totalorder %s22, 1
      %p117 = por %p115, %p116
      %p118 = scmp.ne.s32.totalorder %s110, %s113
      %p119 = scmp.eq.s32.totalorder %s22, 0
      %p120 = por %p118, %p119
      %p121 = scmp.ne.s32.totalorder %s110, %s113
      %p122 = scmp.eq.s32.totalorder %s27, 1
      %p123 = por %p121, %p122
      %p124 = scmp.ne.s32.totalorder %s113, %s114
      %p125 = scmp.eq.s32.totalorder %s27, 0
      %p126 = por %p124, %p125
      %p127 = scmp.ne.s32.totalorder %s113, %s114
      %p128 = scmp.eq.s32.totalorder %s28, 1
      %p129 = por %p127, %p128
      %p131 = scmp.ne.s32.totalorder %s114, %s130
      %p132 = scmp.eq.s32.totalorder %s28, 0
      %p133 = por %p131, %p132
      %s134 = ssub.s32 %s22, %s29
      %p135 = scmp.eq.s32.totalorder %s134, 0
      %s137 = sadd.s32 %s136, 1
      %s138 = scalar_select %p135, %s136, %s137
      %p141 = pneg %p135
      %p142 = scmp.eq.s32.totalorder %s22, 1
      %p143 = por %p141, %p142
      %p144 = scmp.ne.s32.totalorder %s136, %s139
      %p145 = scmp.eq.s32.totalorder %s22, 0
      %p146 = por %p144, %p145
      %p147 = scmp.ne.s32.totalorder %s136, %s139
      %p148 = scmp.eq.s32.totalorder %s27, 1
      %p149 = por %p147, %p148
      %p150 = scmp.ne.s32.totalorder %s139, %s140
      %p151 = scmp.eq.s32.totalorder %s27, 0
      %p152 = por %p150, %p151
      %p153 = scmp.ne.s32.totalorder %s139, %s140
      %p154 = scmp.eq.s32.totalorder %s28, 1
      %p155 = por %p153, %p154
      %p157 = scmp.ne.s32.totalorder %s140, %s156
      %p158 = scmp.eq.s32.totalorder %s28, 0
      %p159 = por %p157, %p158
      %p160 = scmp.le.s32.totalorder 1, %s22
      %p161 = scmp.lt.s32.totalorder %s22, 3
      %p162 = pnand %p160, %p161
      %p163 = pneg %p162
      // Predicated region
      $region9: #{tpu_custom_call.1} parent=5 // pred_check
        _
      $region10: #{tpu_custom_call.1} parent=5 // pred_check_branch
        %165 = sbr.rel (%p162) target = $region12
      $region11: #{tpu_custom_call.1} parent=5 // pred_region
        %s166 = ssub.s32 %s22, 1
      $region12: #{tpu_custom_call.1} parent=5 // pred_fallthru
        _
      %p167 = scmp.lt.s32.totalorder %s22, 2
      // Predicated region
      $region13: #{tpu_custom_call.1} parent=5 // pred_check
        %p168 = pneg %p167
      $region14: #{tpu_custom_call.1} parent=5 // pred_check_branch
        %170 = sbr.rel (%p168) target = $region16
      $region15: #{tpu_custom_call.1} parent=5 // pred_region
        // Predicated region
        $region17: #{tpu_custom_call.1} parent=15 // pred_check
          %p171 = pneg %p42
        $region18: #{tpu_custom_call.1} parent=15 // pred_check_branch
          %173 = sbr.rel (%p171) target = $region20
        $region19: #{tpu_custom_call.1} parent=15 // pred_region
          %s174 = sand.u32 %s32, 1
          %s175 = scalar_lea.sflag [#allocation3], %s174
          %s176 = sand.u32 %s32, 1
          %s177 = smul.addr %s176, 16
          %s178 = scalar_lea.vmem [#allocation2], %s177
          %180 = vsyncadd %s175, 0
          %s181 = smul.addr %s22, 2
          %s182 = smul.addr %s181, 8
          %s183 = scalar_lea.hbm %s0, %s182
          %s184 = sshll.u32 %s183, 4
          %s185 = int_to_ptr.hbm [resolvable:$true] %s184
          %s186 = sshll.u32 %s178, 4
          %s187 = int_to_ptr.vmem [resolvable:$true] %s186
          %192 = dma.hbm_to_vmem [thread:$0]  %s185, 256, %s187, %s175, 128, 128, 8
        $region20: #{tpu_custom_call.1} parent=15 // pred_fallthru
          _
        // Predicated region
        $region21: #{tpu_custom_call.1} parent=15 // pred_check
          %p193 = pneg %p68
        $region22: #{tpu_custom_call.1} parent=15 // pred_check_branch
          %195 = sbr.rel (%p193) target = $region24
        $region23: #{tpu_custom_call.1} parent=15 // pred_region
          %s196 = sand.u32 %s22, 1
          %s197 = scalar_lea.sflag [#allocation6], %s196
          %s198 = sand.u32 %s58, 1
          %s199 = smul.addr %s198, 16
          %s200 = scalar_lea.vmem [#allocation5], %s199
          %202 = vsyncadd %s197, 0
          %s203 = smul.addr %s22, 2
          %s204 = smul.addr %s203, 8
          %s205 = scalar_lea.hbm %s1, %s204
          %s206 = sshll.u32 %s205, 4
          %s207 = int_to_ptr.hbm [resolvable:$true] %s206
          %s208 = sshll.u32 %s200, 4
          %s209 = int_to_ptr.vmem [resolvable:$true] %s208
          %214 = dma.hbm_to_vmem [thread:$0]  %s207, 256, %s209, %s197, 128, 128, 8
        $region24: #{tpu_custom_call.1} parent=15 // pred_fallthru
          _
        // Predicated region
        $region25: #{tpu_custom_call.1} parent=15 // pred_check
          %p215 = pneg %p94
        $region26: #{tpu_custom_call.1} parent=15 // pred_check_branch
          %217 = sbr.rel (%p215) target = $region28
        $region27: #{tpu_custom_call.1} parent=15 // pred_region
          %s218 = sand.u32 %s22, 1
          %s219 = scalar_lea.sflag [#allocation6], %s218
          %s220 = sand.u32 %s84, 1
          %s221 = smul.addr %s220, 16
          %s222 = scalar_lea.vmem [#allocation7], %s221
          %224 = vsyncadd %s219, 0
          %s225 = smul.addr %s22, 2
          %s226 = smul.addr %s225, 8
          %s227 = scalar_lea.hbm %s2, %s226
          %s228 = sshll.u32 %s227, 4
          %s229 = int_to_ptr.hbm [resolvable:$true] %s228
          %s230 = sshll.u32 %s222, 4
          %s231 = int_to_ptr.vmem [resolvable:$true] %s230
          %236 = dma.hbm_to_vmem [thread:$0]  %s229, 256, %s231, %s219, 128, 128, 8
        $region28: #{tpu_custom_call.1} parent=15 // pred_fallthru
          _
        // Predicated region
        $region29: #{tpu_custom_call.1} parent=15 // pred_check
          %p237 = pneg %p120
        $region30: #{tpu_custom_call.1} parent=15 // pred_check_branch
          %239 = sbr.rel (%p237) target = $region32
        $region31: #{tpu_custom_call.1} parent=15 // pred_region
          %s240 = sand.u32 %s110, 1
          %s241 = scalar_lea.sflag [#allocation9], %s240
          %s242 = sand.u32 %s110, 1
          %s243 = smul.addr %s242, 16
          %s244 = scalar_lea.vmem [#allocation8], %s243
          %246 = vsyncadd %s241, 0
          %s247 = smul.addr %s22, 2
          %s248 = smul.addr %s247, 8
          %s249 = scalar_lea.hbm %s3, %s248
          %s250 = sshll.u32 %s249, 4
          %s251 = int_to_ptr.hbm [resolvable:$true] %s250
          %s252 = sshll.u32 %s244, 4
          %s253 = int_to_ptr.vmem [resolvable:$true] %s252
          %258 = dma.hbm_to_vmem [thread:$0]  %s251, 256, %s253, %s241, 128, 128, 8
        $region32: #{tpu_custom_call.1} parent=15 // pred_fallthru
          _
      $region16: #{tpu_custom_call.1} parent=5 // pred_fallthru
        _
      %p259 = scmp.le.s32.totalorder 1, %s22
      %p260 = scmp.lt.s32.totalorder %s22, 3
      %p261 = pnand %p259, %p260
      %p262 = pneg %p261
      // Predicated region
      $region33: #{tpu_custom_call.1} parent=5 // pred_check
        _
      $region34: #{tpu_custom_call.1} parent=5 // pred_check_branch
        %264 = sbr.rel (%p261) target = $region36
      $region35: #{tpu_custom_call.1} parent=5 // pred_region
        %s265 = ssub.s32 %s22, 1
        %s266 = sand.u32 %s35, 1
        %s267 = scalar_lea.sflag [#allocation3], %s266
        %s268 = sand.u32 %s35, 1
        %s269 = smul.addr %s268, 16
        %s270 = scalar_lea.vmem [#allocation2], %s269
        // Predicated region
        $region37: #{tpu_custom_call.1} parent=35 // pred_check
          %p271 = pneg %p48
        $region38: #{tpu_custom_call.1} parent=35 // pred_check_branch
          %273 = sbr.rel (%p271) target = $region40
        $region39: #{tpu_custom_call.1} parent=35 // pred_region
          %275 = dma.done %s267, 256
        $region40: #{tpu_custom_call.1} parent=35 // pred_fallthru
          _
        %s276 = sand.u32 %s27, 1
        %s277 = scalar_lea.sflag [#allocation6], %s276
        %s278 = sand.u32 %s61, 1
        %s279 = smul.addr %s278, 16
        %s280 = scalar_lea.vmem [#allocation5], %s279
        // Predicated region
        $region41: #{tpu_custom_call.1} parent=35 // pred_check
          %p281 = pneg %p74
        $region42: #{tpu_custom_call.1} parent=35 // pred_check_branch
          %283 = sbr.rel (%p281) target = $region44
        $region43: #{tpu_custom_call.1} parent=35 // pred_region
          %285 = dma.done %s277, 256
        $region44: #{tpu_custom_call.1} parent=35 // pred_fallthru
          _
        %s286 = sand.u32 %s27, 1
        %s287 = scalar_lea.sflag [#allocation6], %s286
        %s288 = sand.u32 %s87, 1
        %s289 = smul.addr %s288, 16
        %s290 = scalar_lea.vmem [#allocation7], %s289
        // Predicated region
        $region45: #{tpu_custom_call.1} parent=35 // pred_check
          %p291 = pneg %p100
        $region46: #{tpu_custom_call.1} parent=35 // pred_check_branch
          %293 = sbr.rel (%p291) target = $region48
        $region47: #{tpu_custom_call.1} parent=35 // pred_region
          %295 = dma.done %s287, 256
        $region48: #{tpu_custom_call.1} parent=35 // pred_fallthru
          _
        %s296 = sand.u32 %s113, 1
        %s297 = scalar_lea.sflag [#allocation9], %s296
        %s298 = sand.u32 %s113, 1
        %s299 = smul.addr %s298, 16
        %s300 = scalar_lea.vmem [#allocation8], %s299
        // Predicated region
        $region49: #{tpu_custom_call.1} parent=35 // pred_check
          %p301 = pneg %p126
        $region50: #{tpu_custom_call.1} parent=35 // pred_check_branch
          %303 = sbr.rel (%p301) target = $region52
        $region51: #{tpu_custom_call.1} parent=35 // pred_region
          %305 = dma.done %s297, 256
        $region52: #{tpu_custom_call.1} parent=35 // pred_fallthru
          _
        %s306 = sand.u32 %s35, 1
        %s307 = scalar_lea.sflag [#allocation3], %s306
        %s308 = sand.u32 %s35, 1
        %s309 = smul.addr %s308, 16
        %s310 = scalar_lea.vmem [#allocation2], %s309
        %p311 = pneg %p48
        %p312 = pneg %p45
        %s313 = sand.u32 %s27, 1
        %s314 = scalar_lea.sflag [#allocation6], %s313
        %s315 = sand.u32 %s61, 1
        %s316 = smul.addr %s315, 16
        %s317 = scalar_lea.vmem [#allocation5], %s316
        %p318 = pneg %p74
        %p319 = pneg %p71
        %s320 = sand.u32 %s27, 1
        %s321 = scalar_lea.sflag [#allocation6], %s320
        %s322 = sand.u32 %s87, 1
        %s323 = smul.addr %s322, 16
        %s324 = scalar_lea.vmem [#allocation7], %s323
        %p325 = pneg %p100
        %p326 = pneg %p97
        %s327 = sand.u32 %s113, 1
        %s328 = scalar_lea.sflag [#allocation9], %s327
        %s329 = sand.u32 %s113, 1
        %s330 = smul.addr %s329, 16
        %s331 = scalar_lea.vmem [#allocation8], %s330
        %p332 = pneg %p126
        %p333 = pneg %p123
        %p334 = pneg %p152
        %p335 = pneg %p149
        %s336 = sand.u32 %s139, 1
        %s337 = scalar_lea.sflag [#allocation4], %s336
        %s338 = sand.u32 %s139, 1
        %s339 = smul.addr %s338, 16
        %s340 = scalar_lea.vmem [#allocation10], %s339
        %v341 = vld [vmem:[%s270] sm:$0xff]
        %v342 = vld [vmem:[%s270 + $0x8] sm:$0xff]
        %v343 = vld [vmem:[%s280] sm:$0xff]
        %v344 = vld [vmem:[%s280 + $0x8] sm:$0xff]
        %v345 = vld [vmem:[%s290] sm:$0xff]
        %v346 = vld [vmem:[%s290 + $0x8] sm:$0xff]
        %v347 = vld [vmem:[%s300] sm:$0xff]
        %v348 = vld [vmem:[%s300 + $0x8] sm:$0xff]
        %vm349 = vcmask 130048
        %v351 = vsel %vm349, %v343, 0
        %v354 = vsel %vm349, %v344, 0
        %356 = vmatpush.msra.mxu0 0.0
        %357 = vmatpush.msra.mxu0 0.0
        %358 = vmatpush.msra.mxu0 0.0
        %359 = vmatpush.msra.mxu0 0.0
        %360 = vmatpush.msra.mxu0 0.0
        %361 = vmatpush.msra.mxu0 0.0
        %362 = vmatpush.msra.mxu0 0.0
        %363 = vmatpush.msra.mxu0 0.0
        %364 = vmatpush.msra.mxu0 0.0
        %365 = vmatpush.msra.mxu0 0.0
        %366 = vmatpush.msra.mxu0 0.0
        %367 = vmatpush.msra.mxu0 0.0
        %368 = vmatpush.msra.mxu0 0.0
        %369 = vmatpush.msra.mxu0 0.0
        %370 = vmatpush.msra.mxu0 %v346
        %371 = vmatpush.msra.mxu0 %v345
        %372 = vmatmul.f32.gmra.mxu0 %v351
        %v373 = vpop.f32.mrf.mxu0
        %v374 = vadd.f32 0.0, %v373
        %375 = vmatmul.f32.gmra.mxu0 %v354
        %v376 = vpop.f32.mrf.mxu0
        %v377 = vadd.f32 0.0, %v376
        %378 = vdwg.mxu0
        %v379 = vadd.f32 %v341, %v374
        %v380 = vadd.f32 %v342, %v377
        %v382 = vsel %vm349, %v379, 0
        %v385 = vsel %vm349, %v380, 0
        %387 = vmatpush.msra.mxu0 0.0
        %388 = vmatpush.msra.mxu0 0.0
        %389 = vmatpush.msra.mxu0 0.0
        %390 = vmatpush.msra.mxu0 0.0
        %391 = vmatpush.msra.mxu0 0.0
        %392 = vmatpush.msra.mxu0 0.0
        %393 = vmatpush.msra.mxu0 0.0
        %394 = vmatpush.msra.mxu0 0.0
        %395 = vmatpush.msra.mxu0 0.0
        %396 = vmatpush.msra.mxu0 0.0
        %397 = vmatpush.msra.mxu0 0.0
        %398 = vmatpush.msra.mxu0 0.0
        %399 = vmatpush.msra.mxu0 0.0
        %400 = vmatpush.msra.mxu0 0.0
        %401 = vmatpush.msra.mxu0 %v348
        %402 = vmatpush.msra.mxu0 %v347
        %403 = vmatmul.f32.gmra.mxu0 %v382
        %v404 = vpop.f32.mrf.mxu0
        %v405 = vadd.f32 0.0, %v404
        %406 = vmatmul.f32.gmra.mxu0 %v385
        %v407 = vpop.f32.mrf.mxu0
        %v408 = vadd.f32 0.0, %v407
        %409 = vdwg.mxu0
        %410 = vst [vmem:[%s340] sm:$0xff] %v405
        %411 = vst [vmem:[%s340 + $0x8] sm:$0xff] %v408
        %s412 = sand.u32 %s139, 1
        %s413 = scalar_lea.sflag [#allocation4], %s412
        %s414 = sand.u32 %s139, 1
        %s415 = smul.addr %s414, 16
        %s416 = scalar_lea.vmem [#allocation10], %s415
        // Predicated region
        $region53: #{tpu_custom_call.1} parent=35 // pred_check
          %p417 = pneg %p149
        $region54: #{tpu_custom_call.1} parent=35 // pred_check_branch
          %419 = sbr.rel (%p417) target = $region56
        $region55: #{tpu_custom_call.1} parent=35 // pred_region
          %421 = vsyncadd %s413, 0
          %s422 = smul.addr %s27, 2
          %s423 = smul.addr %s422, 8
          %s424 = scalar_lea.hbm %s4, %s423
          %s425 = sshll.u32 %s416, 4
          %s426 = int_to_ptr.vmem [resolvable:$true] %s425
          %s427 = sshll.u32 %s424, 4
          %s428 = int_to_ptr.hbm [resolvable:$true] %s427
          %433 = dma.vmem_to_hbm [thread:$0]  %s426, 256, %s428, %s413, 128, 128, 8
        $region56: #{tpu_custom_call.1} parent=35 // pred_fallthru
          _
      $region36: #{tpu_custom_call.1} parent=5 // pred_fallthru
        _
      %p434 = scmp.le.s32.totalorder 2, %s22
      // Predicated region
      $region57: #{tpu_custom_call.1} parent=5 // pred_check
        %p435 = pneg %p434
      $region58: #{tpu_custom_call.1} parent=5 // pred_check_branch
        %437 = sbr.rel (%p435) target = $region60
      $region59: #{tpu_custom_call.1} parent=5 // pred_region
        %s438 = ssub.s32 %s22, 2
        // Predicated region
        $region61: #{tpu_custom_call.1} parent=59 // pred_check
          %p439 = pneg %p155
        $region62: #{tpu_custom_call.1} parent=59 // pred_check_branch
          %441 = sbr.rel (%p439) target = $region64
        $region63: #{tpu_custom_call.1} parent=59 // pred_region
          %s442 = sand.u32 %s140, 1
          %s443 = scalar_lea.sflag [#allocation4], %s442
          %s444 = sand.u32 %s140, 1
          %s445 = smul.addr %s444, 16
          %s446 = scalar_lea.vmem [#allocation10], %s445
          %448 = dma.done %s443, 256
        $region64: #{tpu_custom_call.1} parent=59 // pred_fallthru
          _
      $region60: #{tpu_custom_call.1} parent=5 // pred_fallthru
        _
    $region6: #{tpu_custom_call.1} parent=1 // loop_footer
      %s26 = sadd.s32 1, %s22
    $region7: #{tpu_custom_call.1} parent=1 // loop_footer_branch
      %21 = sbr.rel target = $region3
    $region8: #{tpu_custom_call.1} parent=1 // loop_exit
      _
    %449 = vsyncpa [#allocation3], 1
    %s450 = scalar_lea.sflag [#allocation3], 1
    %451 = vsyncpa %s450, 1
    %452 = vsyncpa [#allocation6], 1
    %s453 = scalar_lea.sflag [#allocation6], 1
    %454 = vsyncpa %s453, 1
    %455 = vsyncpa [#allocation9], 1
    %s456 = scalar_lea.sflag [#allocation9], 1
    %457 = vsyncpa %s456, 1
    %458 = vsyncpa [#allocation4], 1
    %s459 = scalar_lea.sflag [#allocation4], 1
    %460 = vsyncpa %s459, 1

</llo_original>
